<compile_context>
chip_gen: v7x
topology: tpu7x:2x2x1
jax: 0.10.0
libtpu: 0.0.40
codegen_flags: <defaults>
</compile_context>

<pallas_src>
import functools

import numpy as np
import jax
import jax.numpy as jnp
from jax.experimental import pallas as pl
from jax.experimental.pallas import tpu as pltpu


def beltrami_id_kernel(x_ref, w_ref, b_ref, o_ref, *, k):
    """Whole batch in one step; batch folded into the sublane dimension.

    x_ref: (B*C, Lk)   first Lk >= k flattened pixels (HW on the lane dim)
    w_ref: (B*C, B*C)  block-diagonal kron(I_B, W[:C]) of the 1x1-conv weight
    b_ref: (B*C, 1)    conv bias b[:C], tiled per batch element
    o_ref: (B*C, HW)   output: first C conv channels of the GNNID step
    """
    bc, hw = o_ref.shape
    # Mean of the first k pixels (a single lane reduce) BEFORE any matmul —
    # the full 2C x HW conv of the reference is never computed.
    xk_mean = jnp.sum(x_ref[:, :k], axis=-1, keepdims=True) * (1.0 / k)   # (B*C, 1)
    # Broadcast along lanes first so the one matmul has a vanilla
    # (sublane x 128-multiple-lane) shape and its result IS the output block
    # (full-sublane, unmasked stores). MACs = (B*C)^2 * HW ~ 16K here — noise
    # next to the per-step overhead; avoids N=1-dot / in-kernel-reshape
    # lowering edge cases entirely.
    xk_b = jnp.broadcast_to(xk_mean, (bc, hw))                            # (B*C, HW)
    out = jnp.dot(w_ref[...], xk_b, preferred_element_type=jnp.float32)
    o_ref[...] = (out + b_ref[...]).astype(o_ref.dtype)


def beltrami_id(x, w_conv, b_conv, k):
    """x: (B, C, H, W) f32; w_conv: (2C, C, 1, 1); b_conv: (2C,) -> (B, C, H, W)."""
    b, c, h, w = x.shape
    hw = h * w
    assert 1 <= k <= hw, "k must lie in [1, H*W]"
    bc = b * c

    # Smallest 128-lane-aligned pixel prefix that covers the k pixels we read.
    lk = min(hw, ((k + 127) // 128) * 128)

    # Contiguous reshape only — no wrapper transposes, no data movement.
    x2 = x.reshape(bc, hw)                                           # (B*C, HW)

    # Drop the dead half of the conv parameters and pre-build the
    # block-diagonal weight so the whole batch is one full-sublane matmul
    # inside the kernel (fine at small B; tile the batch over grid steps if
    # B*C grows large).
    w_dim = w_conv[:c, :, 0, 0].astype(x.dtype)                      # (C, C)
    w_big = jnp.kron(jnp.eye(b, dtype=x.dtype), w_dim)               # (B*C, B*C)
    b_big = jnp.tile(b_conv[:c].astype(x.dtype), b).reshape(bc, 1)   # (B*C, 1)

    kern = functools.partial(beltrami_id_kernel, k=k)
    out2 = pl.pallas_call(
        kern,
        out_shape=jax.ShapeDtypeStruct((bc, hw), x.dtype),
        grid_spec=pltpu.PrefetchScalarGridSpec(
            num_scalar_prefetch=0,
            grid=(1,),  # one step: amortize the fixed per-step cost over the batch
            in_specs=[
                pl.BlockSpec((bc, lk), lambda i: (0, 0)),   # only the first lk pixels
                pl.BlockSpec((bc, bc), lambda i: (0, 0)),
                pl.BlockSpec((bc, 1), lambda i: (0, 0)),
            ],
            out_specs=pl.BlockSpec((bc, hw), lambda i: (0, 0)),
        ),
        compiler_params=pltpu.CompilerParams(
            dimension_semantics=("arbitrary",)),
    )(x2, w_big, b_big)

    return out2.reshape(b, c, h, w)


if __name__ == "__main__":
    b, dim, h, w = 2, 4, 16, 16
    k = 4

    key = jax.random.PRNGKey(0)
    kx, kw, kb = jax.random.split(key, 3)
    x = jax.random.normal(kx, (b, dim, h, w), jnp.float32)
    # Conv2d(dim, 2*dim, kernel_size=1) parameters, deterministic synthetic init.
    w_conv = jax.random.normal(kw, (2 * dim, dim, 1, 1), jnp.float32) * 0.1
    b_conv = jax.random.normal(kb, (2 * dim,), jnp.float32) * 0.1

    out = beltrami_id(x, w_conv, b_conv, k)
    jax.block_until_ready(out)
    assert out.shape == (b, dim, h, w)

    # Reference: full 2C-channel conv, GNNID with sim == 0 (empty `pos` slice
    # -> uniform attention over pixels 0..k-1), then BeltramiID's [:, :dim].
    x_cl = jnp.transpose(x.reshape(b, dim, h * w), (0, 2, 1))        # (B, HW, C)
    fp = x_cl @ w_conv[:, :, 0, 0].T + b_conv                        # (B, HW, 2C)
    gnn = jnp.broadcast_to(jnp.mean(fp[:, :k, :], axis=1, keepdims=True), fp.shape)
    ref = jnp.transpose(gnn.reshape(b, h, w, 2 * dim), (0, 3, 1, 2))[:, :dim]
    np.testing.assert_allclose(np.asarray(out), np.asarray(ref), rtol=1e-5, atol=1e-5)

    print("KERNEL_OK")
</pallas_src>

<mosaic_0001>
module attributes {stable_mosaic.version = 11 : i64} {
  func.func @beltrami_id_kernel(%arg0: i32, %arg1: memref<8x128xf32, #tpu.memory_space<vmem>>, %arg2: memref<8x8xf32, #tpu.memory_space<vmem>>, %arg3: memref<8x1xf32, #tpu.memory_space<vmem>>, %arg4: memref<8x256xf32, #tpu.memory_space<vmem>>) attributes {dimension_semantics = [#tpu.dimension_semantics<arbitrary>], iteration_bounds = array<i64: 1>, scalar_prefetch = 0 : i64, scratch_operands = 0 : i64, tpu.core_type = #tpu.core_type<tc>, window_params = [{transform_indices = @transform_0, window_bounds = array<i64: 8, 128>}, {pipeline_mode = #tpu.pipeline_mode<synchronous>, transform_indices = @transform_1, window_bounds = array<i64: 8, 8>}, {pipeline_mode = #tpu.pipeline_mode<synchronous>, transform_indices = @transform_2, window_bounds = array<i64: 8, 1>}, {pipeline_mode = #tpu.pipeline_mode<synchronous>, transform_indices = @transform_3, window_bounds = array<i64: 8, 256>}]} {
    %c0 = arith.constant 0 : index
    %c0_0 = arith.constant 0 : index
    %0 = vector.load %arg1[%c0, %c0_0] : memref<8x128xf32, #tpu.memory_space<vmem>>, vector<8x4xf32>
    %cst = arith.constant dense<0.000000e+00> : vector<8xf32>
    %1 = vector.multi_reduction <add>, %0, %cst [1] : vector<8x4xf32> to vector<8xf32>
    %2 = vector.shape_cast %1 : vector<8xf32> to vector<8x1xf32>
    %cst_1 = arith.constant 2.500000e-01 : f32
    %3 = vector.broadcast %cst_1 : f32 to vector<8x1xf32>
    %4 = arith.mulf %2, %3 : vector<8x1xf32>
    %5 = vector.shape_cast %4 : vector<8x1xf32> to vector<8x1xf32>
    %6 = vector.broadcast %5 : vector<8x1xf32> to vector<8x256xf32>
    %c0_2 = arith.constant 0 : index
    %c0_3 = arith.constant 0 : index
    %7 = vector.load %arg2[%c0_2, %c0_3] : memref<8x8xf32, #tpu.memory_space<vmem>>, vector<8x8xf32>
    %cst_4 = arith.constant dense<0.000000e+00> : vector<8x256xf32>
    %8 = tpu.matmul %7, %6, %cst_4 {dimension_numbers = #tpu.dot_dimension_numbers<[1], [0], [0], [1], [0, 0, 1, 1], [], []>} : vector<8x8xf32>, vector<8x256xf32>, vector<8x256xf32> -> vector<8x256xf32>
    %c0_5 = arith.constant 0 : index
    %c0_6 = arith.constant 0 : index
    %9 = vector.load %arg3[%c0_5, %c0_6] : memref<8x1xf32, #tpu.memory_space<vmem>>, vector<8x1xf32>
    %10 = vector.broadcast %9 : vector<8x1xf32> to vector<8x256xf32>
    %11 = arith.addf %8, %10 : vector<8x256xf32>
    %c0_7 = arith.constant 0 : index
    %c0_8 = arith.constant 0 : index
    %12 = vector.load %arg4[%c0_7, %c0_8] : memref<8x256xf32, #tpu.memory_space<vmem>>, vector<8x256xf32>
    tpu.vector_store %arg4[%c0_7, %c0_8], %11 {strides = array<i32>} : memref<8x256xf32, #tpu.memory_space<vmem>>, vector<8x256xf32>,
    return
  }
  func.func @transform_0(%arg0: i32) -> (i32, i32) {
    %c0_i32 = arith.constant 0 : i32
    %c0_i32_0 = arith.constant 0 : i32
    %c0_i32_1 = arith.constant 0 : i32
    return %c0_i32, %c0_i32_0 : i32, i32
  }
  func.func @transform_1(%arg0: i32) -> (i32, i32) {
    %c0_i32 = arith.constant 0 : i32
    %c0_i32_0 = arith.constant 0 : i32
    %c0_i32_1 = arith.constant 0 : i32
    return %c0_i32, %c0_i32_0 : i32, i32
  }
  func.func @transform_2(%arg0: i32) -> (i32, i32) {
    %c0_i32 = arith.constant 0 : i32
    %c0_i32_0 = arith.constant 0 : i32
    %c0_i32_1 = arith.constant 0 : i32
    return %c0_i32, %c0_i32_0 : i32, i32
  }
  func.func @transform_3(%arg0: i32) -> (i32, i32) {
    %c0_i32 = arith.constant 0 : i32
    %c0_i32_0 = arith.constant 0 : i32
    %c0_i32_1 = arith.constant 0 : i32
    return %c0_i32, %c0_i32_0 : i32, i32
  }
}

</mosaic_0001>

<llo_original>
// kernel: tpu_custom_call.1
$region0: #{tpu_custom_call.1}
  #allocation0 [shape = 'u32[]', space=smem, size = 0x4, offset = 0x4, fixed_abs, tag = 'smem constant byte address 0x4 - core index']
  #allocation1 [shape = 'u32[144,128]{1,0:T(1,128)}', space=vmem, size = 0x12000, scoped, tag = 'internal scratch']
  %s0 = inlined_call_operand.hbm [shape: f32[8,256], index: 0, kind: input, shape index: {}]
  %s1 = inlined_call_operand.vmem [shape: f32[8,8], index: 1, kind: input, shape index: {}]
  %s2 = inlined_call_operand.vmem [shape: f32[8,1], index: 2, kind: input, shape index: {}]
  %s3 = inlined_call_operand.hbm [shape: f32[8,256], index: 3, kind: output, shape index: {}]
  %s4 = sld [smem:[#allocation0]]
  $region26: #{tpu_custom_call.1} parent=0
    _
  %s6 = ssub.s32 1, %s4
  %s7 = scalar_select 0, %s6, %s4
  $region1: #{tpu_custom_call.1} parent=0
    #allocation2 [shape = 'u8[4096]{0}', space=vmem, size = 0x1000, scoped, tag = 'input window, operand 0, single buffered']
    #allocation3 [shape = 's32[1]{0}', space=sflag, size = 0x4, scoped, tag = 'scoped memory for tpu_custom_call.1']
    #allocation4 [shape = 's32[1]{0}', space=sflag, size = 0x4, scoped, tag = 'scoped memory for tpu_custom_call.1']
    #allocation5 [shape = 'u8[8192]{0}', space=vmem, size = 0x2000, scoped, tag = 'output window, operand 0, single buffered']
    %8 = vsyncpa [#allocation3], 0
    %9 = vsyncpa [#allocation4], 0
    // Predicated region
    $region2: #{tpu_custom_call.1} parent=1 // pred_check
      _
    $region3: #{tpu_custom_call.1} parent=1 // pred_check_branch
      %11 = sbr.rel (0) target = $region5
    $region4: #{tpu_custom_call.1} parent=1 // pred_region
      %s13 = ssub.s32 128, 128
      %14 = vsyncadd [#allocation3], %s13
      %s16 = sshll.u32 [#allocation2], 4
      %s17 = int_to_ptr.vmem [resolvable:$true] %s16
      %19 = dma.hbm_to_vmem [thread:$0]  %s0, 128, %s17, [#allocation3]
    $region5: #{tpu_custom_call.1} parent=1 // pred_fallthru
      _
    // Predicated region
    $region6: #{tpu_custom_call.1} parent=1 // pred_check
      _
    $region7: #{tpu_custom_call.1} parent=1 // pred_check_branch
      %21 = sbr.rel (0) target = $region9
    $region8: #{tpu_custom_call.1} parent=1 // pred_region
      _
    $region9: #{tpu_custom_call.1} parent=1 // pred_fallthru
      _
    // Predicated region
    $region10: #{tpu_custom_call.1} parent=1 // pred_check
      _
    $region11: #{tpu_custom_call.1} parent=1 // pred_check_branch
      %23 = sbr.rel (0) target = $region13
    $region12: #{tpu_custom_call.1} parent=1 // pred_region
      _
    $region13: #{tpu_custom_call.1} parent=1 // pred_fallthru
      _
    // Predicated region
    $region14: #{tpu_custom_call.1} parent=1 // pred_check
      _
    $region15: #{tpu_custom_call.1} parent=1 // pred_check_branch
      %25 = sbr.rel (0) target = $region17
    $region16: #{tpu_custom_call.1} parent=1 // pred_region
      %26 = dma.done [#allocation3], 128
    $region17: #{tpu_custom_call.1} parent=1 // pred_fallthru
      _
    %v27 = vld [vmem:[#allocation2] sm:$0xff]
    %vm28 = vcmask 31744
    %v29 = vsel %vm28, %v27, 0.0
    %30 = vadd.xlane.f32.xlu0 %v29
    %v31 = vpop.xlane.xlu0 %30
    %v32 = vmul.f32 %v31, 0.25
    %v33 = vld [vmem:[%s1] sm:$0xff]
    %v34 = vld [vmem:[%s2] sm:$0xff]
    %36 = vset.pattern.permute.xlu0 0
    %37 = vperm.xlu0 %36, %v34
    %v38 = vpop.permute.xlu0 %37
    %vm40 = vcmask 64512
    %v42 = vsel %vm40, %v33, 0
    %44 = vmatprep.subr.mxu0 %v32
    %45 = vmatpush1.msra.mxu0 %v32
    %46 = vmatprep.subr.mxu0 0.0
    %47 = vmatpush1.msra.mxu0 0.0
    %48 = vmatprep.subr.mxu0 0.0
    %49 = vmatpush1.msra.mxu0 0.0
    %50 = vmatprep.subr.mxu0 0.0
    %51 = vmatpush1.msra.mxu0 0.0
    %52 = vmatprep.subr.mxu0 0.0
    %53 = vmatpush1.msra.mxu0 0.0
    %54 = vmatprep.subr.mxu0 0.0
    %55 = vmatpush1.msra.mxu0 0.0
    %56 = vmatprep.subr.mxu0 0.0
    %57 = vmatpush1.msra.mxu0 0.0
    %58 = vmatprep.subr.mxu0 0.0
    %59 = vmatpush1.msra.mxu0 0.0
    %60 = vmatprep.subr.mxu0 0.0
    %61 = vmatpush1.msra.mxu0 0.0
    %62 = vmatprep.subr.mxu0 0.0
    %63 = vmatpush1.msra.mxu0 0.0
    %64 = vmatprep.subr.mxu0 0.0
    %65 = vmatpush1.msra.mxu0 0.0
    %66 = vmatprep.subr.mxu0 0.0
    %67 = vmatpush1.msra.mxu0 0.0
    %68 = vmatprep.subr.mxu0 0.0
    %69 = vmatpush1.msra.mxu0 0.0
    %70 = vmatprep.subr.mxu0 0.0
    %71 = vmatpush1.msra.mxu0 0.0
    %72 = vmatprep.subr.mxu0 0.0
    %73 = vmatpush1.msra.mxu0 0.0
    %74 = vmatprep.subr.mxu0 0.0
    %75 = vmatpush1.msra.mxu0 0.0
    %76 = vmatprep.subr.mxu0 0.0
    %77 = vmatpush1.msra.mxu0 0.0
    %78 = vmatprep.subr.mxu0 0.0
    %79 = vmatpush1.msra.mxu0 0.0
    %80 = vmatprep.subr.mxu0 0.0
    %81 = vmatpush1.msra.mxu0 0.0
    %82 = vmatprep.subr.mxu0 0.0
    %83 = vmatpush1.msra.mxu0 0.0
    %84 = vmatprep.subr.mxu0 0.0
    %85 = vmatpush1.msra.mxu0 0.0
    %86 = vmatprep.subr.mxu0 0.0
    %87 = vmatpush1.msra.mxu0 0.0
    %88 = vmatprep.subr.mxu0 0.0
    %89 = vmatpush1.msra.mxu0 0.0
    %90 = vmatprep.subr.mxu0 0.0
    %91 = vmatpush1.msra.mxu0 0.0
    %92 = vmatprep.subr.mxu0 0.0
    %93 = vmatpush1.msra.mxu0 0.0
    %94 = vmatprep.subr.mxu0 0.0
    %95 = vmatpush1.msra.mxu0 0.0
    %96 = vmatprep.subr.mxu0 0.0
    %97 = vmatpush1.msra.mxu0 0.0
    %98 = vmatprep.subr.mxu0 0.0
    %99 = vmatpush1.msra.mxu0 0.0
    %100 = vmatprep.subr.mxu0 0.0
    %101 = vmatpush1.msra.mxu0 0.0
    %102 = vmatprep.subr.mxu0 0.0
    %103 = vmatpush1.msra.mxu0 0.0
    %104 = vmatprep.subr.mxu0 0.0
    %105 = vmatpush1.msra.mxu0 0.0
    %106 = vmatprep.subr.mxu0 0.0
    %107 = vmatpush1.msra.mxu0 0.0
    %108 = vmatprep.mubr.f32.mxu0 0.0
    %109 = vmatmul.mubr.f32.gmra.mrb[0].mxu0 %v42
    %v110 = vpop.f32.mrb[0].mxu0
    %v111 = vadd.f32 %v38, %v110
    %v112 = vpop.f32.mrb[0].mxu0
    %v113 = vadd.f32 %v38, %v112
    %114 = vdwg.mxu0
    %115 = vst [vmem:[#allocation5] sm:$0xff] %v111
    %116 = vst [vmem:[#allocation5 + $0x8] sm:$0xff] %v113
    // Predicated region
    $region18: #{tpu_custom_call.1} parent=1 // pred_check
      _
    $region19: #{tpu_custom_call.1} parent=1 // pred_check_branch
      %118 = sbr.rel (0) target = $region21
    $region20: #{tpu_custom_call.1} parent=1 // pred_region
      %s120 = ssub.s32 256, 256
      %121 = vsyncadd [#allocation4], %s120
      %s123 = sshll.u32 [#allocation5], 4
      %s124 = int_to_ptr.vmem [resolvable:$true] %s123
      %126 = dma.vmem_to_hbm [thread:$0]  %s124, 256, %s3, [#allocation4]
    $region21: #{tpu_custom_call.1} parent=1 // pred_fallthru
      _
    // Predicated region
    $region22: #{tpu_custom_call.1} parent=1 // pred_check
      _
    $region23: #{tpu_custom_call.1} parent=1 // pred_check_branch
      %128 = sbr.rel (0) target = $region25
    $region24: #{tpu_custom_call.1} parent=1 // pred_region
      %129 = dma.done [#allocation4], 256
    $region25: #{tpu_custom_call.1} parent=1 // pred_fallthru
      _
    %130 = vsyncpa [#allocation3], 1
    %131 = vsyncpa [#allocation4], 1

</llo_original>
